<compile_context>
chip_gen: v6e
topology: v6e:2x2x1
jax: 0.10.0
libtpu: 0.0.40
codegen_flags: <defaults>
</compile_context>

<pallas_src>
import jax
import jax.numpy as jnp
from jax.experimental import pallas as pl
from jax.experimental.pallas import tpu as pltpu


def linear_sub_relu_kernel(x_ref, wt_ref, b_ref, o_ref):
    # x_ref:  (TB, IN)   input rows (lane-major, natural layout)
    # wt_ref: (IN, OUT)  weight, already transposed once at param-prep time
    # b_ref:  (1,  OUT)  bias
    # o_ref:  (TB, OUT)
    y = jnp.dot(x_ref[...], wt_ref[...], preferred_element_type=jnp.float32)
    y = y + b_ref[...] - 0.9           # bias + constant: one VPU op each
    o_ref[...] = jnp.maximum(y, 0.0).astype(o_ref.dtype)


def prepare_params(weight, bias):
    """One-time parameter prep (outside the hot path).

    weight: (OUT, IN) nn.Linear convention  ->  (IN, OUT) for a plain x @ Wt
    bias:   (OUT,)                          ->  (1, OUT)
    """
    wt = jnp.asarray(weight, jnp.float32).T
    b2 = jnp.asarray(bias, jnp.float32).reshape(1, -1)
    return wt, b2


def linear_sub_relu(x, wt, b2, *, block_b=512):
    """y = relu(x @ wt + b2 - 0.9).  x: (B, IN), wt: (IN, OUT), b2: (1, OUT)."""
    B, IN = x.shape
    IN_w, OUT = wt.shape
    assert IN == IN_w and b2.shape == (1, OUT)

    # Batch tile: either the whole (small) batch, or a multiple-of-8 block.
    tb = B if B <= block_b else block_b
    grid = (pl.cdiv(B, tb),)

    flops = 2 * B * IN * OUT
    bytes_accessed = 4 * (x.size + wt.size + b2.size + B * OUT)

    return pl.pallas_call(
        linear_sub_relu_kernel,
        out_shape=jax.ShapeDtypeStruct((B, OUT), x.dtype),
        grid=grid,
        in_specs=[
            pl.BlockSpec((tb, IN), lambda i: (i, 0)),     # x: tiled over batch
            pl.BlockSpec((IN, OUT), lambda i: (0, 0)),    # weight: resident
            pl.BlockSpec((1, OUT), lambda i: (0, 0)),     # bias:   resident
        ],
        out_specs=pl.BlockSpec((tb, OUT), lambda i: (i, 0)),
        compiler_params=pltpu.CompilerParams(
            dimension_semantics=("parallel",)),
        cost_estimate=pl.CostEstimate(
            flops=flops, transcendentals=0, bytes_accessed=bytes_accessed),
    )(x, wt, b2)


if __name__ == "__main__":
    key = jax.random.PRNGKey(0)
    kx, kw, kb = jax.random.split(key, 3)

    in_features, out_features = 5, 5
    batch = 1  # matches the spec: x = torch.randn(1, 5)

    # Deterministic parameter init (mimic nn.Linear uniform(-1/sqrt(in), 1/sqrt(in)))
    bound = 1.0 / jnp.sqrt(jnp.float32(in_features))
    weight = jax.random.uniform(
        kw, (out_features, in_features), jnp.float32, -bound, bound)
    bias = jax.random.uniform(
        kb, (out_features,), jnp.float32, -bound, bound)

    x = jax.random.normal(kx, (batch, in_features), jnp.float32)

    # One-time prep (outside the hot path); per-call wrapper does no repacking.
    wt, b2 = prepare_params(weight, bias)

    out = linear_sub_relu(x, wt, b2)
    out = jax.block_until_ready(out)

    # Reference check in plain JAX (PyTorch forward semantics).
    ref = jnp.maximum(x @ weight.T + bias - 0.9, 0.0)
    assert jnp.allclose(out, ref, atol=1e-5, rtol=1e-5), (out, ref)

    print("KERNEL_OK")
</pallas_src>

<mosaic_0001>
module attributes {stable_mosaic.version = 11 : i64} {
  func.func @linear_sub_relu_kernel(%arg0: i32, %arg1: memref<1x5xf32, #tpu.memory_space<vmem>>, %arg2: memref<5x5xf32, #tpu.memory_space<vmem>>, %arg3: memref<1x5xf32, #tpu.memory_space<vmem>>, %arg4: memref<1x5xf32, #tpu.memory_space<vmem>>) attributes {dimension_semantics = [#tpu.dimension_semantics<parallel>], iteration_bounds = array<i64: 1>, scalar_prefetch = 0 : i64, scratch_operands = 0 : i64, tpu.core_type = #tpu.core_type<tc>, window_params = [{transform_indices = @transform_0, window_bounds = array<i64: 1, 5>}, {pipeline_mode = #tpu.pipeline_mode<synchronous>, transform_indices = @transform_1, window_bounds = array<i64: 5, 5>}, {pipeline_mode = #tpu.pipeline_mode<synchronous>, transform_indices = @transform_2, window_bounds = array<i64: 1, 5>}, {transform_indices = @transform_3, window_bounds = array<i64: 1, 5>}]} {
    %c0 = arith.constant 0 : index
    %c0_0 = arith.constant 0 : index
    %0 = vector.load %arg1[%c0, %c0_0] : memref<1x5xf32, #tpu.memory_space<vmem>>, vector<1x5xf32>
    %c0_1 = arith.constant 0 : index
    %c0_2 = arith.constant 0 : index
    %1 = vector.load %arg2[%c0_1, %c0_2] : memref<5x5xf32, #tpu.memory_space<vmem>>, vector<5x5xf32>
    %cst = arith.constant dense<0.000000e+00> : vector<1x5xf32>
    %2 = tpu.matmul %0, %1, %cst {dimension_numbers = #tpu.dot_dimension_numbers<[1], [0], [0], [1], [0, 0, 1, 1], [], []>} : vector<1x5xf32>, vector<5x5xf32>, vector<1x5xf32> -> vector<1x5xf32>
    %c0_3 = arith.constant 0 : index
    %c0_4 = arith.constant 0 : index
    %3 = vector.load %arg3[%c0_3, %c0_4] : memref<1x5xf32, #tpu.memory_space<vmem>>, vector<1x5xf32>
    %4 = arith.addf %2, %3 : vector<1x5xf32>
    %cst_5 = arith.constant 0.899999976 : f32
    %5 = vector.broadcast %cst_5 : f32 to vector<1x5xf32>
    %6 = arith.subf %4, %5 : vector<1x5xf32>
    %cst_6 = arith.constant 0.000000e+00 : f32
    %7 = vector.broadcast %cst_6 : f32 to vector<1x5xf32>
    %8 = arith.maximumf %6, %7 : vector<1x5xf32>
    %c0_7 = arith.constant 0 : index
    %c0_8 = arith.constant 0 : index
    %9 = vector.load %arg4[%c0_7, %c0_8] : memref<1x5xf32, #tpu.memory_space<vmem>>, vector<1x5xf32>
    tpu.vector_store %arg4[%c0_7, %c0_8], %8 {strides = array<i32>} : memref<1x5xf32, #tpu.memory_space<vmem>>, vector<1x5xf32>,
    return
  }
  func.func @transform_0(%arg0: i32) -> (i32, i32) {
    %c0_i32 = arith.constant 0 : i32
    %c0_i32_0 = arith.constant 0 : i32
    return %arg0, %c0_i32 : i32, i32
  }
  func.func @transform_1(%arg0: i32) -> (i32, i32) {
    %c0_i32 = arith.constant 0 : i32
    %c0_i32_0 = arith.constant 0 : i32
    %c0_i32_1 = arith.constant 0 : i32
    return %c0_i32, %c0_i32_0 : i32, i32
  }
  func.func @transform_2(%arg0: i32) -> (i32, i32) {
    %c0_i32 = arith.constant 0 : i32
    %c0_i32_0 = arith.constant 0 : i32
    %c0_i32_1 = arith.constant 0 : i32
    return %c0_i32, %c0_i32_0 : i32, i32
  }
  func.func @transform_3(%arg0: i32) -> (i32, i32) {
    %c0_i32 = arith.constant 0 : i32
    %c0_i32_0 = arith.constant 0 : i32
    return %arg0, %c0_i32 : i32, i32
  }
}

</mosaic_0001>

<llo_original>
// kernel: tpu_custom_call.1
$region0: #{tpu_custom_call.1}
  #allocation0 [shape = 'u32[]', space=smem, size = 0x4, offset = 0x4, fixed_abs, tag = 'smem constant byte address 0x4 - core index']
  #allocation1 [shape = 'u32[144,128]{1,0:T(1,128)}', space=vmem, size = 0x12000, scoped, tag = 'internal scratch']
  %s0 = inlined_call_operand.hbm [shape: f32[1,5], index: 0, kind: input, shape index: {}]
  %s1 = inlined_call_operand.hbm [shape: f32[5,5], index: 1, kind: input, shape index: {}]
  %s2 = inlined_call_operand.vmem [shape: f32[1,5], index: 2, kind: input, shape index: {}]
  %s3 = inlined_call_operand.hbm [shape: f32[1,5], index: 3, kind: output, shape index: {}]
  %s4 = sld [smem:[#allocation0]]
  $region30: #{tpu_custom_call.1} parent=0
    _
  %s6 = ssub.s32 1, %s4
  %s7 = scalar_select 0, %s6, %s4
  $region1: #{tpu_custom_call.1} parent=0
    #allocation2 [shape = 'u8[512]{0}', space=vmem, size = 0x400, scoped, tag = 'input window, operand 0, single buffered']
    #allocation3 [shape = 's32[1]{0}', space=sflag, size = 0x4, scoped, tag = 'scoped memory for tpu_custom_call.1']
    #allocation4 [shape = 's32[1]{0}', space=sflag, size = 0x4, scoped, tag = 'scoped memory for tpu_custom_call.1']
    #allocation5 [shape = 'u8[4096]{0}', space=vmem, size = 0x1000, scoped, tag = 'input window, operand 1, single buffered']
    #allocation6 [shape = 's32[1]{0}', space=sflag, size = 0x4, scoped, tag = 'scoped memory for tpu_custom_call.1']
    #allocation7 [shape = 'u8[512]{0}', space=vmem, size = 0x400, scoped, tag = 'output window, operand 0, single buffered']
    %8 = vsyncpa [#allocation3], 0
    %9 = vsyncpa [#allocation6], 0
    %10 = vsyncpa [#allocation4], 0
    // Predicated region
    $region2: #{tpu_custom_call.1} parent=1 // pred_check
      _
    $region3: #{tpu_custom_call.1} parent=1 // pred_check_branch
      %12 = sbr.rel (0) target = $region5
    $region4: #{tpu_custom_call.1} parent=1 // pred_region
      %s14 = ssub.s32 16, 16
      %15 = vsyncadd [#allocation3], %s14
      %s17 = sshll.u32 [#allocation2], 4
      %s18 = int_to_ptr.vmem [resolvable:$true] %s17
      %20 = dma.hbm_to_vmem [thread:$0]  %s0, 16, %s18, [#allocation3]
    $region5: #{tpu_custom_call.1} parent=1 // pred_fallthru
      _
    // Predicated region
    $region6: #{tpu_custom_call.1} parent=1 // pred_check
      _
    $region7: #{tpu_custom_call.1} parent=1 // pred_check_branch
      %22 = sbr.rel (0) target = $region9
    $region8: #{tpu_custom_call.1} parent=1 // pred_region
      %s24 = ssub.s32 128, 128
      %25 = vsyncadd [#allocation6], %s24
      %s27 = sshll.u32 [#allocation5], 4
      %s28 = int_to_ptr.vmem [resolvable:$true] %s27
      %30 = dma.hbm_to_vmem [thread:$0]  %s1, 128, %s28, [#allocation6]
    $region9: #{tpu_custom_call.1} parent=1 // pred_fallthru
      _
    // Predicated region
    $region10: #{tpu_custom_call.1} parent=1 // pred_check
      _
    $region11: #{tpu_custom_call.1} parent=1 // pred_check_branch
      %32 = sbr.rel (0) target = $region13
    $region12: #{tpu_custom_call.1} parent=1 // pred_region
      _
    $region13: #{tpu_custom_call.1} parent=1 // pred_fallthru
      _
    // Predicated region
    $region14: #{tpu_custom_call.1} parent=1 // pred_check
      _
    $region15: #{tpu_custom_call.1} parent=1 // pred_check_branch
      %34 = sbr.rel (0) target = $region17
    $region16: #{tpu_custom_call.1} parent=1 // pred_region
      %35 = dma.done [#allocation3], 16
    $region17: #{tpu_custom_call.1} parent=1 // pred_fallthru
      _
    // Predicated region
    $region18: #{tpu_custom_call.1} parent=1 // pred_check
      _
    $region19: #{tpu_custom_call.1} parent=1 // pred_check_branch
      %37 = sbr.rel (0) target = $region21
    $region20: #{tpu_custom_call.1} parent=1 // pred_region
      %38 = dma.done [#allocation6], 128
    $region21: #{tpu_custom_call.1} parent=1 // pred_fallthru
      _
    %v39 = vld [vmem:[#allocation2] sm:$0x1]
    %v40 = vld [vmem:[#allocation5] sm:$0x1f]
    %v41 = vld [vmem:[%s2] sm:$0x1]
    %vm42 = vcmask 39936
    %v44 = vsel %vm42, %v39, 0
    %vm46 = vcmask 1044480
    %v48 = vsel %vm46, %v40, 0
    %50 = vmatprep.subr.mxu0 0.0
    %51 = vmatpush1.msra.mxu0 0.0
    %52 = vmatprep.subr.mxu0 0.0
    %53 = vmatpush1.msra.mxu0 0.0
    %54 = vmatprep.subr.mxu0 0.0
    %55 = vmatpush1.msra.mxu0 0.0
    %56 = vmatprep.subr.mxu0 0.0
    %57 = vmatpush1.msra.mxu0 0.0
    %58 = vmatprep.subr.mxu0 0.0
    %59 = vmatpush1.msra.mxu0 0.0
    %60 = vmatprep.subr.mxu0 0.0
    %61 = vmatpush1.msra.mxu0 0.0
    %62 = vmatprep.subr.mxu0 0.0
    %63 = vmatpush1.msra.mxu0 0.0
    %64 = vmatprep.subr.mxu0 0.0
    %65 = vmatpush1.msra.mxu0 0.0
    %66 = vmatprep.subr.mxu0 0.0
    %67 = vmatpush1.msra.mxu0 0.0
    %68 = vmatprep.subr.mxu0 0.0
    %69 = vmatpush1.msra.mxu0 0.0
    %70 = vmatprep.subr.mxu0 0.0
    %71 = vmatpush1.msra.mxu0 0.0
    %72 = vmatprep.subr.mxu0 0.0
    %73 = vmatpush1.msra.mxu0 0.0
    %74 = vmatprep.subr.mxu0 0.0
    %75 = vmatpush1.msra.mxu0 0.0
    %76 = vmatprep.subr.mxu0 0.0
    %77 = vmatpush1.msra.mxu0 0.0
    %78 = vmatprep.subr.mxu0 0.0
    %79 = vmatpush1.msra.mxu0 0.0
    %80 = vmatprep.subr.mxu0 0.0
    %81 = vmatpush1.msra.mxu0 %v48
    %82 = vmatprep.subr.mxu0 0.0
    %83 = vmatpush2.msra.mxu0 0.0
    %84 = vmatprep.subr.mxu0 0.0
    %85 = vmatpush2.msra.mxu0 0.0
    %86 = vmatprep.subr.mxu0 0.0
    %87 = vmatpush2.msra.mxu0 0.0
    %88 = vmatprep.subr.mxu0 0.0
    %89 = vmatpush2.msra.mxu0 0.0
    %90 = vmatprep.subr.mxu0 0.0
    %91 = vmatpush2.msra.mxu0 0.0
    %92 = vmatprep.subr.mxu0 0.0
    %93 = vmatpush2.msra.mxu0 0.0
    %94 = vmatprep.subr.mxu0 0.0
    %95 = vmatpush2.msra.mxu0 0.0
    %96 = vmatprep.subr.mxu0 0.0
    %97 = vmatpush2.msra.mxu0 0.0
    %98 = vmatprep.subr.mxu0 0.0
    %99 = vmatpush2.msra.mxu0 0.0
    %100 = vmatprep.subr.mxu0 0.0
    %101 = vmatpush2.msra.mxu0 0.0
    %102 = vmatprep.subr.mxu0 0.0
    %103 = vmatpush2.msra.mxu0 0.0
    %104 = vmatprep.subr.mxu0 0.0
    %105 = vmatpush2.msra.mxu0 0.0
    %106 = vmatprep.subr.mxu0 0.0
    %107 = vmatpush2.msra.mxu0 0.0
    %108 = vmatprep.subr.mxu0 0.0
    %109 = vmatpush2.msra.mxu0 0.0
    %110 = vmatprep.subr.mxu0 0.0
    %111 = vmatpush2.msra.mxu0 0.0
    %112 = vmatprep.subr.mxu0 0.0
    %113 = vmatpush2.msra.mxu0 0.0
    %114 = vmatprep.mubr.f32.mxu0 0.0
    %115 = vmatmul.mubr.f32.gmra.mxu0 %v44
    %v116 = vpop.f32.mrf.mxu0
    %v117 = vadd.f32 %v41, %v116
    %v118 = vpop.f32.mrf.mxu0
    %119 = vdwg.mxu0
    %v120 = vsub.f32 %v117, 0.9
    %v121 = vmax.f32 %v120, 0.0
    %vm122 = vcmask 32768
    %123 = vst.msk [vmem:[#allocation7] sm:$0x1] %vm122, %v121
    // Predicated region
    $region22: #{tpu_custom_call.1} parent=1 // pred_check
      _
    $region23: #{tpu_custom_call.1} parent=1 // pred_check_branch
      %125 = sbr.rel (0) target = $region25
    $region24: #{tpu_custom_call.1} parent=1 // pred_region
      %s127 = ssub.s32 16, 16
      %128 = vsyncadd [#allocation4], %s127
      %s130 = sshll.u32 [#allocation7], 4
      %s131 = int_to_ptr.vmem [resolvable:$true] %s130
      %133 = dma.vmem_to_hbm [thread:$0]  %s131, 16, %s3, [#allocation4]
    $region25: #{tpu_custom_call.1} parent=1 // pred_fallthru
      _
    // Predicated region
    $region26: #{tpu_custom_call.1} parent=1 // pred_check
      _
    $region27: #{tpu_custom_call.1} parent=1 // pred_check_branch
      %135 = sbr.rel (0) target = $region29
    $region28: #{tpu_custom_call.1} parent=1 // pred_region
      %136 = dma.done [#allocation4], 16
    $region29: #{tpu_custom_call.1} parent=1 // pred_fallthru
      _
    %137 = vsyncpa [#allocation3], 1
    %138 = vsyncpa [#allocation6], 1
    %139 = vsyncpa [#allocation4], 1

</llo_original>
